<compile_context>
chip_gen: v7x
topology: tpu7x:2x2x1
jax: 0.10.0
libtpu: 0.0.40
codegen_flags: <defaults>
</compile_context>

<pallas_src>
import functools

import jax
import jax.numpy as jnp
from jax import lax
from jax.experimental import pallas as pl
from jax.experimental.pallas import tpu as pltpu


GAMMA = 0.15
EPS = 1e-5
LANES = 128
SUBLANES = 8
CHUNK = SUBLANES * LANES                 # 1024 elements = one (8,128) tile
MAX_TILE_BYTES = 2 * 1024 * 1024         # 2 MiB input block: ~85-86% HBM roofline band
MIN_TILE_ROWS = 512                      # 256 KiB f32 block; smaller => step-overhead bound
VMEM_LIMIT_BYTES = 48 * 1024 * 1024      # room for 8 MiB dbl-buffered blocks + f32 temporaries


def _silog_kernel(x_ref, t_ref, out_ref, *, eps, tile_rows, total_rows,
                  steps_per_split, need_tail_mask):
    i = pl.program_id(1)

    @pl.when(i == 0)
    def _init():
        # Output block index only depends on the leading (parallel) axis, so
        # the block stays resident in VMEM across the "arbitrary" axis and
        # doubles as the accumulator.
        out_ref[...] = jnp.zeros_like(out_ref)

    # Per-tile cast (inputs may be bf16/f16/f32); no wrapper-side cast pass.
    x = x_ref[...].astype(jnp.float32)
    t = t_ref[...].astype(jnp.float32)
    mask = (t > 0.0) & (x > 0.0)

    if need_tail_mask:
        # Pathological row counts only: rows past the true extent in the
        # boundary-padded last block hold garbage -> mask by global row id.
        row0 = (pl.program_id(0) * steps_per_split + i) * tile_rows
        row_ids = row0 + lax.broadcasted_iota(jnp.int32, (tile_rows, LANES), 0)
        mask = mask & (row_ids < total_rows)

    m = mask.astype(jnp.float32)
    # Two EUP logs + one VALU sub (exactly the torch expression). Any NaN/Inf
    # from log on masked-out / garbage values is discarded by the where
    # BEFORE accumulation (do not reorder).
    d = jnp.where(mask, jnp.log(x + eps) - jnp.log(t + eps), 0.0)

    # Fold the (tile_rows, 128) tile into (8, 128) per-vreg partials with pure
    # VALU adds; the cross-lane/sublane reduce happens in the wrapper epilogue.
    k = tile_rows // SUBLANES
    out_ref[0, 0] += m.reshape(k, SUBLANES, LANES).sum(axis=0)
    out_ref[0, 1] += d.reshape(k, SUBLANES, LANES).sum(axis=0)
    out_ref[0, 2] += (d * d).reshape(k, SUBLANES, LANES).sum(axis=0)


def _plan_tiling(rows, max_tile_rows):
    """rows and max_tile_rows are multiples of 8.

    Returns (tile_rows, n_split, steps_per_split, need_tail_mask).
    Prefers exact tilings (no per-step tail mask) and an even total step
    count so the leading "parallel" axis can use both v7x TensorCores.
    """
    if rows <= max_tile_rows:
        half = rows // 2
        if half >= MIN_TILE_ROWS and half % SUBLANES == 0:
            return half, 2, 1, False
        return rows, 1, 1, False
    best_any = None
    for cand in range(max_tile_rows, MIN_TILE_ROWS - 1, -SUBLANES):
        if rows % cand == 0:
            steps = rows // cand
            if steps % 2 == 0:
                return cand, 2, steps // 2, False
            if best_any is None:
                best_any = (cand, steps)
    if best_any is not None:
        cand, steps = best_any
        return cand, 1, steps, False
    # Pathological (e.g. 8 * large prime): ragged last block, in-kernel mask.
    return max_tile_rows, 1, pl.cdiv(rows, max_tile_rows), True


def _kernel_partials(x2, t2, eps, tile_rows, n_split, steps_per_split,
                     need_tail_mask, total_rows):
    kernel = functools.partial(
        _silog_kernel, eps=eps, tile_rows=tile_rows, total_rows=total_rows,
        steps_per_split=steps_per_split, need_tail_mask=need_tail_mask)

    def in_map(c, i):
        return (c * steps_per_split + i, 0)

    def out_map(c, i):
        return (c, 0, 0, 0)

    part = pl.pallas_call(
        kernel,
        out_shape=jax.ShapeDtypeStruct((n_split, 3, SUBLANES, LANES), jnp.float32),
        grid_spec=pltpu.PrefetchScalarGridSpec(
            num_scalar_prefetch=0,
            grid=(n_split, steps_per_split),
            in_specs=[
                pl.BlockSpec((tile_rows, LANES), in_map),
                pl.BlockSpec((tile_rows, LANES), in_map),
            ],
            out_specs=pl.BlockSpec((1, 3, SUBLANES, LANES), out_map),
        ),
        compiler_params=pltpu.CompilerParams(
            dimension_semantics=("parallel", "arbitrary"),
            vmem_limit_bytes=VMEM_LIMIT_BYTES,
        ),
    )(x2, t2)
    # Tiny (n_split, 3, 8, 128) cross-lane reduce in plain JAX -> (3,)
    return jnp.sum(part, axis=(0, 2, 3))


def _plain_partials(x, t, eps):
    # Tiny (<1024-element) remainder handled in plain JAX (no pad copy).
    x = x.astype(jnp.float32)
    t = t.astype(jnp.float32)
    mask = (t > 0.0) & (x > 0.0)
    d = jnp.where(mask, jnp.log(x + eps) - jnp.log(t + eps), 0.0)
    return jnp.sum(mask.astype(jnp.float32)), jnp.sum(d), jnp.sum(d * d)


def silog_loss(inp: jax.Array, tgt: jax.Array,
               gamma: float = GAMMA, eps: float = EPS) -> jax.Array:
    # Mirror the module: squeeze a singleton channel axis of NCHW inputs.
    if inp.ndim == 4 and inp.shape[1] == 1:
        inp = jnp.squeeze(inp, axis=1)
    if tgt.ndim == 4 and tgt.shape[1] == 1:
        tgt = jnp.squeeze(tgt, axis=1)

    x = inp.reshape(-1)
    t = tgt.reshape(-1)
    assert x.shape == t.shape, "input and target must have the same size"
    n = x.shape[0]

    itemsize = max(jnp.dtype(inp.dtype).itemsize, jnp.dtype(tgt.dtype).itemsize)
    max_tile_rows = max(
        SUBLANES, (MAX_TILE_BYTES // (LANES * itemsize)) // SUBLANES * SUBLANES)

    # Kernel consumes the 1024-aligned prefix; the remainder (<1024 elements)
    # is folded in below with a tiny plain-JAX reduction.
    n_main = (n // CHUNK) * CHUNK

    cnt = jnp.float32(0.0)
    s = jnp.float32(0.0)
    s2 = jnp.float32(0.0)

    if n_main > 0:
        xm = x if n_main == n else x[:n_main]
        tm = t if n_main == n else t[:n_main]
        rows = n_main // LANES                          # multiple of 8
        tile_rows, n_split, steps, tail = _plan_tiling(rows, max_tile_rows)
        sums = _kernel_partials(xm.reshape(rows, LANES), tm.reshape(rows, LANES),
                                eps, tile_rows, n_split, steps, tail, rows)
        cnt, s, s2 = cnt + sums[0], s + sums[1], s2 + sums[2]

    if n_main < n:
        c_r, s_r, s2_r = _plain_partials(x[n_main:], t[n_main:], eps)
        cnt, s, s2 = cnt + c_r, s + s_r, s2 + s2_r

    # Scalar epilogue (negligible): torch.var default is unbiased (n-1).
    mean = s / cnt
    var = (s2 - s * mean) / (cnt - 1.0)
    return jnp.sqrt(var + gamma * mean * mean)


def _silog_ref(inp, tgt, gamma=GAMMA, eps=EPS):
    # Pure-JAX reference mirroring the PyTorch module (two-pass unbiased var).
    if inp.ndim == 4 and inp.shape[1] == 1:
        inp = jnp.squeeze(inp, axis=1)
    if tgt.ndim == 4 and tgt.shape[1] == 1:
        tgt = jnp.squeeze(tgt, axis=1)
    x = inp.reshape(-1).astype(jnp.float32)
    t = tgt.reshape(-1).astype(jnp.float32)
    mask = (t > 0.0) & (x > 0.0)
    d = jnp.where(mask, jnp.log(x + eps) - jnp.log(t + eps), 0.0)
    n_valid = jnp.sum(mask.astype(jnp.float32))
    mean = jnp.sum(d) / n_valid
    var = jnp.sum(jnp.where(mask, (d - mean) ** 2, 0.0)) / (n_valid - 1.0)
    return jnp.sqrt(var + gamma * mean * mean)


if __name__ == "__main__":
    key = jax.random.PRNGKey(0)
    # NCHW depth-map-like inputs (C == 1; the module squeezes the channel axis).
    #  - (2,1,16,32):    1024 elems -> single (8,128) tile, exact grid
    #  - (2,1,320,240):  153600 elems -> two 600-row splits ("parallel" axis)
    #  - (1,1,521,1024): rows = 8*521 (prime) -> ragged fallback w/ tail mask
    #  - (1,1,33,35):    1155 elems -> kernel prefix + plain-JAX remainder path
    shapes = [(2, 1, 16, 32), (2, 1, 320, 240), (1, 1, 521, 1024), (1, 1, 33, 35)]
    for shape in shapes:
        key, k1, k2 = jax.random.split(key, 3)
        # Shift so a fraction of values are <= 0, exercising the mask.
        inp = jax.random.uniform(k1, shape, dtype=jnp.float32) * 2.0 - 0.2
        tgt = jax.random.uniform(k2, shape, dtype=jnp.float32) * 2.0 - 0.2

        loss = silog_loss(inp, tgt)
        jax.block_until_ready(loss)

        ref = _silog_ref(inp, tgt)
        assert jnp.allclose(loss, ref, rtol=1e-3, atol=1e-6), (shape, loss, ref)

    print("KERNEL_OK")
</pallas_src>

<mosaic_0001>
module attributes {stable_mosaic.version = 11 : i64} {
  func.func @_silog_kernel(%arg0: i32, %arg1: i32, %arg2: memref<8x128xf32, #tpu.memory_space<vmem>>, %arg3: memref<8x128xf32, #tpu.memory_space<vmem>>, %arg4: memref<1x3x8x128xf32, #tpu.memory_space<vmem>>) attributes {dimension_semantics = [#tpu.dimension_semantics<parallel>, #tpu.dimension_semantics<arbitrary>], iteration_bounds = array<i64: 1, 1>, scalar_prefetch = 0 : i64, scratch_operands = 0 : i64, tpu.core_type = #tpu.core_type<tc>, window_params = [{transform_indices = @transform_0, window_bounds = array<i64: 8, 128>}, {transform_indices = @transform_1, window_bounds = array<i64: 8, 128>}, {transform_indices = @transform_2, window_bounds = array<i64: 1, 3, 8, 128>}]} {
    %c0_i32 = arith.constant 0 : i32
    %0 = arith.cmpi eq, %arg1, %c0_i32 : i32
    %1 = arith.extui %0 : i1 to i32
    %c0_i32_0 = arith.constant 0 : i32
    %2 = arith.cmpi ne, %1, %c0_i32_0 : i32
    scf.if %2 {
      %cst_33 = arith.constant 0.000000e+00 : f32
      %46 = vector.broadcast %cst_33 : f32 to vector<1x3x8x128xf32>
      %c0_34 = arith.constant 0 : index
      %c0_35 = arith.constant 0 : index
      %c0_36 = arith.constant 0 : index
      %c0_37 = arith.constant 0 : index
      %47 = vector.load %arg4[%c0_34, %c0_35, %c0_36, %c0_37] : memref<1x3x8x128xf32, #tpu.memory_space<vmem>>, vector<1x3x8x128xf32>
      tpu.vector_store %arg4[%c0_34, %c0_35, %c0_36, %c0_37], %46 {strides = array<i32>} : memref<1x3x8x128xf32, #tpu.memory_space<vmem>>, vector<1x3x8x128xf32>,
    } else {
    }
    %c0 = arith.constant 0 : index
    %c0_1 = arith.constant 0 : index
    %3 = vector.load %arg2[%c0, %c0_1] : memref<8x128xf32, #tpu.memory_space<vmem>>, vector<8x128xf32>
    %c0_2 = arith.constant 0 : index
    %c0_3 = arith.constant 0 : index
    %4 = vector.load %arg3[%c0_2, %c0_3] : memref<8x128xf32, #tpu.memory_space<vmem>>, vector<8x128xf32>
    %cst = arith.constant 0.000000e+00 : f32
    %5 = vector.broadcast %cst : f32 to vector<8x128xf32>
    %6 = arith.cmpf ogt, %4, %5 : vector<8x128xf32>
    %cst_4 = arith.constant 0.000000e+00 : f32
    %7 = vector.broadcast %cst_4 : f32 to vector<8x128xf32>
    %8 = arith.cmpf ogt, %3, %7 : vector<8x128xf32>
    %9 = arith.andi %6, %8 : vector<8x128xi1>
    %10 = arith.extui %9 : vector<8x128xi1> to vector<8x128xi32>
    %11 = arith.sitofp %10 : vector<8x128xi32> to vector<8x128xf32>
    %cst_5 = arith.constant 9.99999974E-6 : f32
    %12 = vector.broadcast %cst_5 : f32 to vector<8x128xf32>
    %13 = arith.addf %3, %12 : vector<8x128xf32>
    %14 = math.log %13 : vector<8x128xf32>
    %cst_6 = arith.constant 9.99999974E-6 : f32
    %15 = vector.broadcast %cst_6 : f32 to vector<8x128xf32>
    %16 = arith.addf %4, %15 : vector<8x128xf32>
    %17 = math.log %16 : vector<8x128xf32>
    %18 = arith.subf %14, %17 : vector<8x128xf32>
    %cst_7 = arith.constant 0.000000e+00 : f32
    %19 = vector.broadcast %cst_7 : f32 to vector<8x128xf32>
    %20 = arith.select %9, %18, %19 : vector<8x128xi1>, vector<8x128xf32>
    %c0_8 = arith.constant 0 : index
    %c0_9 = arith.constant 0 : index
    %c0_10 = arith.constant 0 : index
    %c0_11 = arith.constant 0 : index
    %21 = vector.load %arg4[%c0_8, %c0_9, %c0_10, %c0_11] : memref<1x3x8x128xf32, #tpu.memory_space<vmem>>, vector<1x1x8x128xf32>
    %22 = vector.shape_cast %21 : vector<1x1x8x128xf32> to vector<8x128xf32>
    %23 = vector.shape_cast %11 : vector<8x128xf32> to vector<1x8x128xf32>
    %cst_12 = arith.constant dense<0.000000e+00> : vector<8x128xf32>
    %24 = vector.multi_reduction <add>, %23, %cst_12 [0] : vector<1x8x128xf32> to vector<8x128xf32>
    %25 = arith.addf %22, %24 : vector<8x128xf32>
    %c0_13 = arith.constant 0 : index
    %c0_14 = arith.constant 0 : index
    %c0_15 = arith.constant 0 : index
    %c0_16 = arith.constant 0 : index
    %26 = vector.load %arg4[%c0_13, %c0_14, %c0_15, %c0_16] : memref<1x3x8x128xf32, #tpu.memory_space<vmem>>, vector<1x1x8x128xf32>
    %27 = vector.shape_cast %26 : vector<1x1x8x128xf32> to vector<8x128xf32>
    %28 = vector.shape_cast %25 : vector<8x128xf32> to vector<1x1x8x128xf32>
    tpu.vector_store %arg4[%c0_13, %c0_14, %c0_15, %c0_16], %28 {strides = array<i32>} : memref<1x3x8x128xf32, #tpu.memory_space<vmem>>, vector<1x1x8x128xf32>,
    %c0_17 = arith.constant 0 : index
    %c1 = arith.constant 1 : index
    %c0_18 = arith.constant 0 : index
    %c0_19 = arith.constant 0 : index
    %29 = vector.load %arg4[%c0_17, %c1, %c0_18, %c0_19] : memref<1x3x8x128xf32, #tpu.memory_space<vmem>>, vector<1x1x8x128xf32>
    %30 = vector.shape_cast %29 : vector<1x1x8x128xf32> to vector<8x128xf32>
    %31 = vector.shape_cast %20 : vector<8x128xf32> to vector<1x8x128xf32>
    %cst_20 = arith.constant dense<0.000000e+00> : vector<8x128xf32>
    %32 = vector.multi_reduction <add>, %31, %cst_20 [0] : vector<1x8x128xf32> to vector<8x128xf32>
    %33 = arith.addf %30, %32 : vector<8x128xf32>
    %c0_21 = arith.constant 0 : index
    %c1_22 = arith.constant 1 : index
    %c0_23 = arith.constant 0 : index
    %c0_24 = arith.constant 0 : index
    %34 = vector.load %arg4[%c0_21, %c1_22, %c0_23, %c0_24] : memref<1x3x8x128xf32, #tpu.memory_space<vmem>>, vector<1x1x8x128xf32>
    %35 = vector.shape_cast %34 : vector<1x1x8x128xf32> to vector<8x128xf32>
    %36 = vector.shape_cast %33 : vector<8x128xf32> to vector<1x1x8x128xf32>
    tpu.vector_store %arg4[%c0_21, %c1_22, %c0_23, %c0_24], %36 {strides = array<i32>} : memref<1x3x8x128xf32, #tpu.memory_space<vmem>>, vector<1x1x8x128xf32>,
    %c0_25 = arith.constant 0 : index
    %c2 = arith.constant 2 : index
    %c0_26 = arith.constant 0 : index
    %c0_27 = arith.constant 0 : index
    %37 = vector.load %arg4[%c0_25, %c2, %c0_26, %c0_27] : memref<1x3x8x128xf32, #tpu.memory_space<vmem>>, vector<1x1x8x128xf32>
    %38 = vector.shape_cast %37 : vector<1x1x8x128xf32> to vector<8x128xf32>
    %39 = arith.mulf %20, %20 : vector<8x128xf32>
    %40 = vector.shape_cast %39 : vector<8x128xf32> to vector<1x8x128xf32>
    %cst_28 = arith.constant dense<0.000000e+00> : vector<8x128xf32>
    %41 = vector.multi_reduction <add>, %40, %cst_28 [0] : vector<1x8x128xf32> to vector<8x128xf32>
    %42 = arith.addf %38, %41 : vector<8x128xf32>
    %c0_29 = arith.constant 0 : index
    %c2_30 = arith.constant 2 : index
    %c0_31 = arith.constant 0 : index
    %c0_32 = arith.constant 0 : index
    %43 = vector.load %arg4[%c0_29, %c2_30, %c0_31, %c0_32] : memref<1x3x8x128xf32, #tpu.memory_space<vmem>>, vector<1x1x8x128xf32>
    %44 = vector.shape_cast %43 : vector<1x1x8x128xf32> to vector<8x128xf32>
    %45 = vector.shape_cast %42 : vector<8x128xf32> to vector<1x1x8x128xf32>
    tpu.vector_store %arg4[%c0_29, %c2_30, %c0_31, %c0_32], %45 {strides = array<i32>} : memref<1x3x8x128xf32, #tpu.memory_space<vmem>>, vector<1x1x8x128xf32>,
    return
  }
  func.func @transform_0(%arg0: i32, %arg1: i32) -> (i32, i32) {
    %c1_i32 = arith.constant 1 : i32
    %0 = arith.muli %arg0, %c1_i32 : i32
    %1 = arith.addi %0, %arg1 : i32
    %c0_i32 = arith.constant 0 : i32
    %c0_i32_0 = arith.constant 0 : i32
    return %1, %c0_i32 : i32, i32
  }
  func.func @transform_1(%arg0: i32, %arg1: i32) -> (i32, i32) {
    %c1_i32 = arith.constant 1 : i32
    %0 = arith.muli %arg0, %c1_i32 : i32
    %1 = arith.addi %0, %arg1 : i32
    %c0_i32 = arith.constant 0 : i32
    %c0_i32_0 = arith.constant 0 : i32
    return %1, %c0_i32 : i32, i32
  }
  func.func @transform_2(%arg0: i32, %arg1: i32) -> (i32, i32, i32, i32) {
    %c0_i32 = arith.constant 0 : i32
    %c0_i32_0 = arith.constant 0 : i32
    %c0_i32_1 = arith.constant 0 : i32
    %c0_i32_2 = arith.constant 0 : i32
    return %arg0, %c0_i32, %c0_i32_0, %c0_i32_1 : i32, i32, i32, i32
  }
}

</mosaic_0001>

<llo_original>
// kernel: tpu_custom_call.1
$region0: #{tpu_custom_call.1}
  #allocation0 [shape = 'u32[]', space=smem, size = 0x4, offset = 0x4, fixed_abs, tag = 'smem constant byte address 0x4 - core index']
  #allocation1 [shape = 'u32[144,128]{1,0:T(1,128)}', space=vmem, size = 0x12000, scoped, tag = 'internal scratch']
  %s0 = inlined_call_operand.hbm [shape: f32[8,128], index: 0, kind: input, shape index: {}]
  %s1 = inlined_call_operand.hbm [shape: f32[8,128], index: 1, kind: input, shape index: {}]
  %s2 = inlined_call_operand.hbm [shape: f32[1,3,8,128], index: 2, kind: output, shape index: {}]
  %s3 = sld [smem:[#allocation0]]
  $region30: #{tpu_custom_call.1} parent=0
    _
  %s5 = ssub.s32 1, %s3
  %s6 = scalar_select 0, %s5, %s3
  $region1: #{tpu_custom_call.1} parent=0
    #allocation2 [shape = 'u8[4096]{0}', space=vmem, size = 0x1000, scoped, tag = 'input window, operand 0, single buffered']
    #allocation3 [shape = 's32[1]{0}', space=sflag, size = 0x4, scoped, tag = 'scoped memory for tpu_custom_call.1']
    #allocation4 [shape = 's32[1]{0}', space=sflag, size = 0x4, scoped, tag = 'scoped memory for tpu_custom_call.1']
    #allocation5 [shape = 'u8[4096]{0}', space=vmem, size = 0x1000, scoped, tag = 'input window, operand 1, single buffered']
    #allocation6 [shape = 's32[1]{0}', space=sflag, size = 0x4, scoped, tag = 'scoped memory for tpu_custom_call.1']
    #allocation7 [shape = 'u8[12288]{0}', space=vmem, size = 0x3000, scoped, tag = 'output window, operand 0, single buffered']
    %7 = vsyncpa [#allocation3], 0
    %8 = vsyncpa [#allocation6], 0
    %9 = vsyncpa [#allocation4], 0
    // Predicated region
    $region2: #{tpu_custom_call.1} parent=1 // pred_check
      _
    $region3: #{tpu_custom_call.1} parent=1 // pred_check_branch
      %11 = sbr.rel (0) target = $region5
    $region4: #{tpu_custom_call.1} parent=1 // pred_region
      %s12 = sadd.s32 0, 0
      %s14 = ssub.s32 128, 128
      %15 = vsyncadd [#allocation3], %s14
      %s16 = smul.addr %s12, 128
      %s17 = scalar_lea.hbm %s0, %s16
      %s19 = sshll.u32 [#allocation2], 4
      %s20 = int_to_ptr.vmem [resolvable:$true] %s19
      %22 = dma.hbm_to_vmem [thread:$0]  %s17, 128, %s20, [#allocation3]
    $region5: #{tpu_custom_call.1} parent=1 // pred_fallthru
      _
    // Predicated region
    $region6: #{tpu_custom_call.1} parent=1 // pred_check
      _
    $region7: #{tpu_custom_call.1} parent=1 // pred_check_branch
      %24 = sbr.rel (0) target = $region9
    $region8: #{tpu_custom_call.1} parent=1 // pred_region
      %s25 = sadd.s32 0, 0
      %s27 = ssub.s32 128, 128
      %28 = vsyncadd [#allocation6], %s27
      %s29 = smul.addr %s25, 128
      %s30 = scalar_lea.hbm %s1, %s29
      %s32 = sshll.u32 [#allocation5], 4
      %s33 = int_to_ptr.vmem [resolvable:$true] %s32
      %35 = dma.hbm_to_vmem [thread:$0]  %s30, 128, %s33, [#allocation6]
    $region9: #{tpu_custom_call.1} parent=1 // pred_fallthru
      _
    // Predicated region
    $region10: #{tpu_custom_call.1} parent=1 // pred_check
      _
    $region11: #{tpu_custom_call.1} parent=1 // pred_check_branch
      %37 = sbr.rel (0) target = $region13
    $region12: #{tpu_custom_call.1} parent=1 // pred_region
      %38 = dma.done [#allocation3], 128
    $region13: #{tpu_custom_call.1} parent=1 // pred_fallthru
      _
    // Predicated region
    $region14: #{tpu_custom_call.1} parent=1 // pred_check
      _
    $region15: #{tpu_custom_call.1} parent=1 // pred_check_branch
      %40 = sbr.rel (0) target = $region17
    $region16: #{tpu_custom_call.1} parent=1 // pred_region
      %41 = dma.done [#allocation6], 128
    $region17: #{tpu_custom_call.1} parent=1 // pred_fallthru
      _
    %s42 = sadd.s32 0, 0
    %s43 = sadd.s32 0, 0
    %p44 = scmp.eq.s32.totalorder 0, 0
    // Predicated region
    $region18: #{tpu_custom_call.1} parent=1 // pred_check
      %p45 = pneg %p44
    $region19: #{tpu_custom_call.1} parent=1 // pred_check_branch
      %47 = sbr.rel (%p45) target = $region21
    $region20: #{tpu_custom_call.1} parent=1 // pred_region
      %48 = vst [vmem:[#allocation7] sm:$0xff] 0.0
      %49 = vst [vmem:[#allocation7 + $0x8] sm:$0xff] 0.0
      %50 = vst [vmem:[#allocation7 + $0x10] sm:$0xff] 0.0
    $region21: #{tpu_custom_call.1} parent=1 // pred_fallthru
      _
    %v51 = vld [vmem:[#allocation2] sm:$0xff]
    %v52 = vld [vmem:[#allocation5] sm:$0xff]
    %vm53 = vcmp.gt.f32.partialorder %v52, 0.0
    %vm54 = vcmp.gt.f32.partialorder %v51, 0.0
    %vm55 = vmand %vm53, %vm54
    %v56 = vsel %vm55, 1, 0
    %v57 = vcvt.s32.f32 %v56
    %v58 = vadd.f32 %v51, 1e-05
    %v59 = vlog2.pop %v58
    %v60 = vmul.f32 %v59, 0.6931472
    %v61 = vadd.f32 %v52, 1e-05
    %v62 = vlog2.pop %v61
    %v63 = vmul.f32 %v62, 0.6931472
    %v64 = vsub.f32 %v60, %v63
    %v65 = vsel %vm55, %v64, 0.0
    %v66 = vld [vmem:[#allocation7] sm:$0xff]
    %v67 = vadd.f32 %v57, 0.0
    %v68 = vadd.f32 %v66, %v67
    %69 = vst [vmem:[#allocation7] sm:$0xff] %v68
    %s70 = scalar_lea.vmem [#allocation7], 8
    %v71 = vld [vmem:[%s70] sm:$0xff]
    %v72 = vadd.f32 %v65, 0.0
    %v73 = vadd.f32 %v71, %v72
    %74 = vst [vmem:[%s70] sm:$0xff] %v73
    %s75 = scalar_lea.vmem [#allocation7], 16
    %v76 = vld [vmem:[%s75] sm:$0xff]
    %v77 = vmul.f32 %v65, %v65
    %v78 = vadd.f32 %v77, 0.0
    %v79 = vadd.f32 %v76, %v78
    %80 = vst [vmem:[%s75] sm:$0xff] %v79
    // Predicated region
    $region22: #{tpu_custom_call.1} parent=1 // pred_check
      _
    $region23: #{tpu_custom_call.1} parent=1 // pred_check_branch
      %82 = sbr.rel (0) target = $region25
    $region24: #{tpu_custom_call.1} parent=1 // pred_region
      %s84 = ssub.s32 384, 384
      %85 = vsyncadd [#allocation4], %s84
      %s86 = sshll.u32 [#allocation7], 4
      %s87 = int_to_ptr.vmem [resolvable:$true] %s86
      %92 = dma.vmem_to_hbm [thread:$0]  %s87, 384, %s2, [#allocation4], 128, 128, 8
    $region25: #{tpu_custom_call.1} parent=1 // pred_fallthru
      _
    // Predicated region
    $region26: #{tpu_custom_call.1} parent=1 // pred_check
      _
    $region27: #{tpu_custom_call.1} parent=1 // pred_check_branch
      %94 = sbr.rel (0) target = $region29
    $region28: #{tpu_custom_call.1} parent=1 // pred_region
      %95 = dma.done [#allocation4], 384
    $region29: #{tpu_custom_call.1} parent=1 // pred_fallthru
      _
    %96 = vsyncpa [#allocation3], 1
    %97 = vsyncpa [#allocation6], 1
    %98 = vsyncpa [#allocation4], 1

</llo_original>
